<compile_context>
chip_gen: v6e
topology: v6e:2x2x1
jax: 0.10.0
libtpu: 0.0.40
codegen_flags: <defaults>
</compile_context>

<pallas_src>
import functools
import math

import jax
import jax.numpy as jnp
from jax.experimental import pallas as pl
from jax.experimental.pallas import tpu as pltpu


# Sublane packing per itemsize: f32 -> 8, bf16 -> 16, int8/fp8 -> 32.
_SUBLANE = {4: 8, 2: 16, 1: 32}


def _round_up(x: int, m: int) -> int:
    return ((x + m - 1) // m) * m


def _sublane(dtype) -> int:
    return _SUBLANE.get(jnp.dtype(dtype).itemsize, 8)


def _vmem_budget():
    """(per-operand block byte target, vmem_limit_bytes), gated by generation."""
    try:
        cap = pltpu.get_tpu_info().vmem_capacity_bytes
    except Exception:
        cap = 64 * 1024 * 1024
    if cap >= 100 * 1024 * 1024:
        # v5e / v6e: 128 MiB physical VMEM -> bigger blocks, higher limit.
        return 4 * 1024 * 1024, 64 * 1024 * 1024
    # v7x: 64 MiB physical (32 MiB scoped default) -> stay within ~32 MiB.
    return 3 * 1024 * 1024, 32 * 1024 * 1024


def _largest_divisor(n: int, cap: int, multiple: int) -> int:
    """Largest d with n % d == 0, d <= cap, d % multiple == 0 (0 if none)."""
    cap = min(cap, n)
    best = 0
    i = 1
    while i * i <= n:
        if n % i == 0:
            for d in (i, n // i):
                if d <= cap and d % multiple == 0 and d > best:
                    best = d
        i += 1
    return best


def _glu_kernel(a_ref, g_ref, o_ref):
    # Elementwise gate: out = a * sigmoid(g).  sigmoid -> EUP, mul -> VPU.
    o_ref[...] = a_ref[...] * jax.nn.sigmoid(g_ref[...])


def _glu_packed_kernel(half, x_ref, o_ref):
    # Packed block [rows, 2*half]: split with a static lane slice in-kernel
    # (cheap VMEM shuffle) instead of paying wrapper-side HBM slice copies.
    a = x_ref[:, :half]
    g = x_ref[:, half:]
    o_ref[...] = a * jax.nn.sigmoid(g)


def _glu_lastdim(x2d: jax.Array, half: int) -> jax.Array:
    """Split axis is last.  x2d: (rows, 2*half) -> (rows, half)."""
    rows, feat2 = x2d.shape
    dtype = x2d.dtype
    itemsize = jnp.dtype(dtype).itemsize
    sub = _sublane(dtype)
    block_bytes, vmem_limit = _vmem_budget()

    aligned = (half % 128 == 0)

    if aligned:
        # Widest 128-multiple divisor of `half` such that >= `sub` rows fit
        # in the per-operand byte budget (long contiguous DMA bursts).
        lane_cap = max(128, block_bytes // (sub * itemsize))
        tile_feat = _largest_divisor(half, lane_cap, 128) or 128
        half_blocks = half // tile_feat
        max_rows = max(sub, (block_bytes // (tile_feat * itemsize)) // sub * sub)
    else:
        # Unaligned half: full-width packed input block, full-extent output
        # last dim (masked vst at the lane edge is far cheaper than wrapper
        # split/pad copies).
        tile_feat = half
        half_blocks = 1
        max_rows = max(sub, (block_bytes // (feat2 * itemsize)) // sub * sub)

    if rows <= sub:
        tile_rows = rows                       # full extent (legal)
    else:
        tile_rows = max(sub, (min(max_rows, rows) // sub) * sub)

    # Megacore: guarantee >= 2 blocks along a parallel axis when possible.
    if pl.cdiv(rows, tile_rows) * half_blocks < 2 and rows > sub:
        tile_rows = max(sub, _round_up(pl.cdiv(rows, 2), sub))

    grid_rows = pl.cdiv(rows, tile_rows)       # ragged last block is masked
    out_shape = jax.ShapeDtypeStruct((rows, half), dtype)
    flops = 2 * rows * half
    trans = rows * half
    bytes_accessed = 3 * rows * half * itemsize

    if aligned:
        return pl.pallas_call(
            _glu_kernel,
            out_shape=out_shape,
            grid_spec=pltpu.PrefetchScalarGridSpec(
                num_scalar_prefetch=0,
                grid=(grid_rows, half_blocks),
                in_specs=[
                    # `a` half: feature blocks [0, half_blocks)
                    pl.BlockSpec((tile_rows, tile_feat), lambda i, j: (i, j)),
                    # `g` half: same array, feature blocks offset by half_blocks
                    pl.BlockSpec((tile_rows, tile_feat),
                                 lambda i, j: (i, j + half_blocks)),
                ],
                out_specs=pl.BlockSpec((tile_rows, tile_feat),
                                       lambda i, j: (i, j)),
            ),
            compiler_params=pltpu.CompilerParams(
                dimension_semantics=("parallel", "parallel"),
                vmem_limit_bytes=vmem_limit,
            ),
            cost_estimate=pl.CostEstimate(
                flops=flops, transcendentals=trans,
                bytes_accessed=bytes_accessed),
        )(x2d, x2d)

    return pl.pallas_call(
        functools.partial(_glu_packed_kernel, half),
        out_shape=out_shape,
        grid_spec=pltpu.PrefetchScalarGridSpec(
            num_scalar_prefetch=0,
            grid=(grid_rows,),
            in_specs=[pl.BlockSpec((tile_rows, feat2), lambda i: (i, 0))],
            out_specs=pl.BlockSpec((tile_rows, half), lambda i: (i, 0)),
        ),
        compiler_params=pltpu.CompilerParams(
            dimension_semantics=("parallel",),
            vmem_limit_bytes=vmem_limit,
        ),
        cost_estimate=pl.CostEstimate(
            flops=flops, transcendentals=trans, bytes_accessed=bytes_accessed),
    )(x2d)


def _glu_middim(x3d: jax.Array, half: int) -> jax.Array:
    """Split axis in the middle (no transpose).  x3d: (pre, 2*half, post)."""
    pre, feat2, post = x3d.shape
    dtype = x3d.dtype
    itemsize = jnp.dtype(dtype).itemsize
    sub = _sublane(dtype)
    block_bytes, vmem_limit = _vmem_budget()

    # Lane (last) dim: keep the original trailing dims in lanes.
    lane_cap = max(128, block_bytes // (sub * itemsize))
    if post % 128 == 0:
        tile_post = _largest_divisor(post, lane_cap, 128) or 128
    else:
        tile_post = post                       # full extent (legal)

    # Sublane (split) dim: divisor of `half`, multiple of the sublane packing,
    # so the `g` window offset (j + half_blocks) lands on a block boundary.
    max_half = max(sub, block_bytes // (tile_post * itemsize))
    tile_half = _largest_divisor(half, max_half, sub) or sub
    half_blocks = half // tile_half

    # Leading dim: grow the block to fill the byte budget.
    per_pre = tile_half * tile_post * itemsize
    tile_pre = max(1, min(pre, block_bytes // max(per_pre, 1)))

    grid = (pl.cdiv(pre, tile_pre), half_blocks, pl.cdiv(post, tile_post))
    # Megacore: guarantee >= 2 blocks when possible.
    if grid[0] * grid[1] * grid[2] < 2 and pre > 1:
        tile_pre = pl.cdiv(pre, 2)
        grid = (pl.cdiv(pre, tile_pre), half_blocks, pl.cdiv(post, tile_post))

    n = pre * half * post
    return pl.pallas_call(
        _glu_kernel,
        out_shape=jax.ShapeDtypeStruct((pre, half, post), dtype),
        grid_spec=pltpu.PrefetchScalarGridSpec(
            num_scalar_prefetch=0,
            grid=grid,
            in_specs=[
                pl.BlockSpec((tile_pre, tile_half, tile_post),
                             lambda i, j, k: (i, j, k)),
                pl.BlockSpec((tile_pre, tile_half, tile_post),
                             lambda i, j, k: (i, j + half_blocks, k)),
            ],
            out_specs=pl.BlockSpec((tile_pre, tile_half, tile_post),
                                   lambda i, j, k: (i, j, k)),
        ),
        compiler_params=pltpu.CompilerParams(
            dimension_semantics=("parallel", "parallel", "parallel"),
            vmem_limit_bytes=vmem_limit,
        ),
        cost_estimate=pl.CostEstimate(
            flops=2 * n, transcendentals=n, bytes_accessed=3 * n * itemsize),
    )(x3d, x3d)


@functools.partial(jax.jit, static_argnames=("dim",))
def glu(inputs: jax.Array, dim: int) -> jax.Array:
    """JAX/Pallas equivalent of the PyTorch GLU module forward."""
    ndim = inputs.ndim
    dim = dim % ndim
    feat2 = inputs.shape[dim]
    if feat2 % 2 != 0:
        raise ValueError("GLU split axis must have even size")
    half = feat2 // 2

    pre = math.prod(inputs.shape[:dim])
    post = math.prod(inputs.shape[dim + 1:])
    out_shape = inputs.shape[:dim] + (half,) + inputs.shape[dim + 1:]
    sub = _sublane(inputs.dtype)

    if post == 1:
        # Split axis is (effectively) the last one: metadata-only reshape.
        out2d = _glu_lastdim(inputs.reshape(pre, feat2), half)
        return out2d.reshape(out_shape)

    if half % sub == 0:
        # Middle split axis: transpose-free 3-D dual-window kernel.
        out3d = _glu_middim(inputs.reshape(pre, feat2, post), half)
        return out3d.reshape(out_shape)

    # TODO(synk): rare fallback (middle split axis with half not a multiple of
    # the sublane packing) still pays a transpose; an in-kernel sublane-offset
    # split could remove it if this case ever matters.
    x = jnp.moveaxis(inputs, dim, -1)
    lead = x.shape[:-1]
    out2d = _glu_lastdim(x.reshape(math.prod(lead), feat2), half)
    return jnp.moveaxis(out2d.reshape(*lead, half), -1, dim)


if __name__ == "__main__":
    key = jax.random.PRNGKey(0)
    k1, k2, k3, k4 = jax.random.split(key, 4)

    def ref_glu(x, dim):
        a, g = jnp.split(x, 2, axis=dim)
        return a * jax.nn.sigmoid(g)

    # 1) Small last-axis GLU, half=32 (unaligned -> packed in-kernel split path).
    x1 = jax.random.normal(k1, (2, 8, 64), dtype=jnp.float32)
    o1 = jax.block_until_ready(glu(x1, 2))
    assert o1.shape == (2, 8, 32)
    assert jnp.allclose(o1, ref_glu(x1, 2), atol=1e-6, rtol=1e-6)

    # 2) Channel-dim GLU (dim=1): transpose-free 3-D dual-window path.
    x2 = jax.random.normal(k2, (4, 256, 32), dtype=jnp.float32)
    o2 = jax.block_until_ready(glu(x2, 1))
    assert o2.shape == (4, 128, 32)
    assert jnp.allclose(o2, ref_glu(x2, 1), atol=1e-6, rtol=1e-6)

    # 3) Last-axis GLU with 128-aligned half and a ragged row count
    #    (dual lane-aligned BlockSpec windows, cdiv grid, no pad / slice).
    x3 = jax.random.normal(k3, (3, 40, 256), dtype=jnp.float32)
    o3 = jax.block_until_ready(glu(x3, -1))
    assert o3.shape == (3, 40, 128)
    assert jnp.allclose(o3, ref_glu(x3, -1), atol=1e-6, rtol=1e-6)

    # 4) dim=0 with tiny half (exercises the rare transpose fallback).
    x4 = jax.random.normal(k4, (8, 4, 16), dtype=jnp.float32)
    o4 = jax.block_until_ready(glu(x4, 0))
    assert o4.shape == (4, 4, 16)
    assert jnp.allclose(o4, ref_glu(x4, 0), atol=1e-6, rtol=1e-6)

    print("KERNEL_OK")
</pallas_src>

<mosaic_0001>
module attributes {stable_mosaic.version = 11 : i64} {
  func.func @_glu_packed_kernel(%arg0: i32, %arg1: memref<8x64xf32, #tpu.memory_space<vmem>>, %arg2: memref<8x32xf32, #tpu.memory_space<vmem>>) attributes {dimension_semantics = [#tpu.dimension_semantics<parallel>], iteration_bounds = array<i64: 2>, scalar_prefetch = 0 : i64, scratch_operands = 0 : i64, tpu.core_type = #tpu.core_type<tc>, window_params = [{transform_indices = @transform_0, window_bounds = array<i64: 8, 64>}, {transform_indices = @transform_1, window_bounds = array<i64: 8, 32>}]} {
    %c0 = arith.constant 0 : index
    %c0_0 = arith.constant 0 : index
    %0 = vector.load %arg1[%c0, %c0_0] : memref<8x64xf32, #tpu.memory_space<vmem>>, vector<8x32xf32>
    %c0_1 = arith.constant 0 : index
    %c32 = arith.constant 32 : index
    %1 = vector.load %arg1[%c0_1, %c32] : memref<8x64xf32, #tpu.memory_space<vmem>>, vector<8x32xf32>
    %2 = arith.negf %1 : vector<8x32xf32>
    %3 = math.exp %2 : vector<8x32xf32>
    %cst = arith.constant 1.000000e+00 : f32
    %4 = vector.broadcast %cst : f32 to vector<8x32xf32>
    %5 = arith.addf %4, %3 : vector<8x32xf32>
    %6 = arith.divf %4, %5 : vector<8x32xf32>
    %7 = arith.mulf %0, %6 : vector<8x32xf32>
    %c0_2 = arith.constant 0 : index
    %c0_3 = arith.constant 0 : index
    %8 = vector.load %arg2[%c0_2, %c0_3] : memref<8x32xf32, #tpu.memory_space<vmem>>, vector<8x32xf32>
    tpu.vector_store %arg2[%c0_2, %c0_3], %7 {strides = array<i32>} : memref<8x32xf32, #tpu.memory_space<vmem>>, vector<8x32xf32>,
    return
  }
  func.func @transform_0(%arg0: i32) -> (i32, i32) {
    %c0_i32 = arith.constant 0 : i32
    %c0_i32_0 = arith.constant 0 : i32
    return %arg0, %c0_i32 : i32, i32
  }
  func.func @transform_1(%arg0: i32) -> (i32, i32) {
    %c0_i32 = arith.constant 0 : i32
    %c0_i32_0 = arith.constant 0 : i32
    return %arg0, %c0_i32 : i32, i32
  }
}

</mosaic_0001>

<llo_original>
// kernel: glu.1
$region0: #{glu.1}
  #allocation0 [shape = 'u32[]', space=smem, size = 0x4, offset = 0x4, fixed_abs, tag = 'smem constant byte address 0x4 - core index']
  #allocation1 [shape = 'u32[144,128]{1,0:T(1,128)}', space=vmem, size = 0x12000, scoped, tag = 'internal scratch']
  %s0 = inlined_call_operand.hbm [shape: f32[16,64], index: 0, kind: input, shape index: {}]
  %s1 = inlined_call_operand.hbm [shape: f32[16,32], index: 1, kind: output, shape index: {}]
  %s2 = sld [smem:[#allocation0]]
  $region41: #{glu.1} parent=0
    _
  %s4 = ssub.s32 1, %s2
  %s5 = scalar_select 0, %s4, %s2
  $region1: #{glu.1} parent=0
    #allocation2 [shape = 'u8[8192]{0}', space=vmem, size = 0x2000, scoped, tag = 'input window, operand 0']
    #allocation3 [shape = 's32[2]{0}', space=sflag, size = 0x8, scoped, tag = 'scoped memory for glu.1']
    #allocation4 [shape = 's32[2]{0}', space=sflag, size = 0x8, scoped, tag = 'scoped memory for glu.1']
    #allocation5 [shape = 'u8[8192]{0}', space=vmem, size = 0x2000, scoped, tag = 'output window, operand 0']
    %6 = vsyncpa [#allocation3], 0
    %s7 = scalar_lea.sflag [#allocation3], 1
    %8 = vsyncpa %s7, 0
    %9 = vsyncpa [#allocation4], 0
    %s10 = scalar_lea.sflag [#allocation4], 1
    %11 = vsyncpa %s10, 0
    loop: start=0, step=1, limit=4
    $region2: #{glu.1} parent=1 // loop_pre_header
      _
    $region3: #{glu.1} parent=1 // loop_header
      %s13 = sphi 0, %s17
      %p14 = scmp.ge.s32.totalorder %s13, 4
      %s23 = sphi 0, %s25
      %s26 = sphi 0, %s23
      %s27 = sphi 0, %s26
      %s43 = sphi 0, %s27
      %s49 = sphi 0, %s51
      %s52 = sphi 0, %s49
      %s53 = sphi 0, %s52
      %s69 = sphi 0, %s53
    $region4: #{glu.1} parent=1 // loop_header_branch
      %16 = sbr.rel (%p14) target = $region8
    $region5: #{glu.1} parent=1 // loop_body
      %s18 = ssub.s32 %s13, 1
      %s19 = ssub.s32 %s13, 2
      %s20 = sadd.s32 %s13, 1
      %s21 = ssub.s32 %s13, %s20
      %p22 = scmp.eq.s32.totalorder %s21, 0
      %s24 = sadd.s32 %s23, 1
      %s25 = scalar_select %p22, %s23, %s24
      %p28 = pneg %p22
      %p29 = scmp.eq.s32.totalorder %s13, 1
      %p30 = por %p28, %p29
      %p31 = scmp.ne.s32.totalorder %s23, %s26
      %p32 = scmp.eq.s32.totalorder %s13, 0
      %p33 = por %p31, %p32
      %p34 = scmp.ne.s32.totalorder %s23, %s26
      %p35 = scmp.eq.s32.totalorder %s18, 1
      %p36 = por %p34, %p35
      %p37 = scmp.ne.s32.totalorder %s26, %s27
      %p38 = scmp.eq.s32.totalorder %s18, 0
      %p39 = por %p37, %p38
      %p40 = scmp.ne.s32.totalorder %s26, %s27
      %p41 = scmp.eq.s32.totalorder %s19, 1
      %p42 = por %p40, %p41
      %p44 = scmp.ne.s32.totalorder %s27, %s43
      %p45 = scmp.eq.s32.totalorder %s19, 0
      %p46 = por %p44, %p45
      %s47 = ssub.s32 %s13, %s20
      %p48 = scmp.eq.s32.totalorder %s47, 0
      %s50 = sadd.s32 %s49, 1
      %s51 = scalar_select %p48, %s49, %s50
      %p54 = pneg %p48
      %p55 = scmp.eq.s32.totalorder %s13, 1
      %p56 = por %p54, %p55
      %p57 = scmp.ne.s32.totalorder %s49, %s52
      %p58 = scmp.eq.s32.totalorder %s13, 0
      %p59 = por %p57, %p58
      %p60 = scmp.ne.s32.totalorder %s49, %s52
      %p61 = scmp.eq.s32.totalorder %s18, 1
      %p62 = por %p60, %p61
      %p63 = scmp.ne.s32.totalorder %s52, %s53
      %p64 = scmp.eq.s32.totalorder %s18, 0
      %p65 = por %p63, %p64
      %p66 = scmp.ne.s32.totalorder %s52, %s53
      %p67 = scmp.eq.s32.totalorder %s19, 1
      %p68 = por %p66, %p67
      %p70 = scmp.ne.s32.totalorder %s53, %s69
      %p71 = scmp.eq.s32.totalorder %s19, 0
      %p72 = por %p70, %p71
      %p73 = scmp.le.s32.totalorder 1, %s13
      %p74 = scmp.lt.s32.totalorder %s13, 3
      %p75 = pnand %p73, %p74
      %p76 = pneg %p75
      // Predicated region
      $region9: #{glu.1} parent=5 // pred_check
        _
      $region10: #{glu.1} parent=5 // pred_check_branch
        %78 = sbr.rel (%p75) target = $region12
      $region11: #{glu.1} parent=5 // pred_region
        %s79 = ssub.s32 %s13, 1
      $region12: #{glu.1} parent=5 // pred_fallthru
        _
      %p80 = scmp.lt.s32.totalorder %s13, 2
      // Predicated region
      $region13: #{glu.1} parent=5 // pred_check
        %p81 = pneg %p80
      $region14: #{glu.1} parent=5 // pred_check_branch
        %83 = sbr.rel (%p81) target = $region16
      $region15: #{glu.1} parent=5 // pred_region
        // Predicated region
        $region17: #{glu.1} parent=15 // pred_check
          %p84 = pneg %p33
        $region18: #{glu.1} parent=15 // pred_check_branch
          %86 = sbr.rel (%p84) target = $region20
        $region19: #{glu.1} parent=15 // pred_region
          %s87 = sand.u32 %s23, 1
          %s88 = scalar_lea.sflag [#allocation3], %s87
          %s89 = sand.u32 %s23, 1
          %s90 = smul.addr %s89, 8
          %s91 = scalar_lea.vmem [#allocation2], %s90
          %s93 = ssub.s32 128, 128
          %94 = vsyncadd %s88, %s93
          %s95 = smul.addr %s13, 128
          %s96 = scalar_lea.hbm %s0, %s95
          %s98 = sshll.u32 %s91, 4
          %s99 = int_to_ptr.vmem [resolvable:$true] %s98
          %101 = dma.hbm_to_vmem [thread:$0]  %s96, 128, %s99, %s88
        $region20: #{glu.1} parent=15 // pred_fallthru
          _
      $region16: #{glu.1} parent=5 // pred_fallthru
        _
      %p102 = scmp.le.s32.totalorder 1, %s13
      %p103 = scmp.lt.s32.totalorder %s13, 3
      %p104 = pnand %p102, %p103
      %p105 = pneg %p104
      // Predicated region
      $region21: #{glu.1} parent=5 // pred_check
        _
      $region22: #{glu.1} parent=5 // pred_check_branch
        %107 = sbr.rel (%p104) target = $region24
      $region23: #{glu.1} parent=5 // pred_region
        %s108 = ssub.s32 %s13, 1
        %s109 = sand.u32 %s26, 1
        %s110 = scalar_lea.sflag [#allocation3], %s109
        %s111 = sand.u32 %s26, 1
        %s112 = smul.addr %s111, 8
        %s113 = scalar_lea.vmem [#allocation2], %s112
        // Predicated region
        $region25: #{glu.1} parent=23 // pred_check
          %p114 = pneg %p39
        $region26: #{glu.1} parent=23 // pred_check_branch
          %116 = sbr.rel (%p114) target = $region28
        $region27: #{glu.1} parent=23 // pred_region
          %117 = dma.done %s110, 128
        $region28: #{glu.1} parent=23 // pred_fallthru
          _
        %s118 = sand.u32 %s26, 1
        %s119 = scalar_lea.sflag [#allocation3], %s118
        %s120 = sand.u32 %s26, 1
        %s121 = smul.addr %s120, 8
        %s122 = scalar_lea.vmem [#allocation2], %s121
        %p123 = pneg %p39
        %p124 = pneg %p36
        %p125 = pneg %p65
        %p126 = pneg %p62
        %s127 = sand.u32 %s52, 1
        %s128 = scalar_lea.sflag [#allocation4], %s127
        %s129 = sand.u32 %s52, 1
        %s130 = smul.addr %s129, 8
        %s131 = scalar_lea.vmem [#allocation5], %s130
        %v132 = vld [vmem:[%s113] sm:$0xff]
        %v133 = vxor.u32 %v132, 2147483648
        %v134 = vmul.f32 %v133, 1.442695
        %v135 = vpow.pop %v134
        %v136 = vadd.f32 %v135, 1.0
        %v137 = vrcp.pop %v136
        %v138 = vmul.f32 1.0, %v137
        %140 = vrot.lane.b32.xlu0 %v138, 96
        %v141 = vpop.permute.xlu0 %140
        %v143 = vmul.f32 %v132, %v141
        %vm144 = vcmask 261120
        %145 = vst.msk [vmem:[%s131] sm:$0xff] %vm144, %v143
        %s146 = sand.u32 %s52, 1
        %s147 = scalar_lea.sflag [#allocation4], %s146
        %s148 = sand.u32 %s52, 1
        %s149 = smul.addr %s148, 8
        %s150 = scalar_lea.vmem [#allocation5], %s149
        // Predicated region
        $region29: #{glu.1} parent=23 // pred_check
          %p151 = pneg %p62
        $region30: #{glu.1} parent=23 // pred_check_branch
          %153 = sbr.rel (%p151) target = $region32
        $region31: #{glu.1} parent=23 // pred_region
          %s155 = ssub.s32 128, 128
          %156 = vsyncadd %s147, %s155
          %s157 = smul.addr %s18, 128
          %s158 = scalar_lea.hbm %s1, %s157
          %s160 = sshll.u32 %s150, 4
          %s161 = int_to_ptr.vmem [resolvable:$true] %s160
          %163 = dma.vmem_to_hbm [thread:$0]  %s161, 128, %s158, %s147
        $region32: #{glu.1} parent=23 // pred_fallthru
          _
      $region24: #{glu.1} parent=5 // pred_fallthru
        _
      %p164 = scmp.le.s32.totalorder 2, %s13
      // Predicated region
      $region33: #{glu.1} parent=5 // pred_check
        %p165 = pneg %p164
      $region34: #{glu.1} parent=5 // pred_check_branch
        %167 = sbr.rel (%p165) target = $region36
      $region35: #{glu.1} parent=5 // pred_region
        %s168 = ssub.s32 %s13, 2
        // Predicated region
        $region37: #{glu.1} parent=35 // pred_check
          %p169 = pneg %p68
        $region38: #{glu.1} parent=35 // pred_check_branch
          %171 = sbr.rel (%p169) target = $region40
        $region39: #{glu.1} parent=35 // pred_region
          %s172 = sand.u32 %s53, 1
          %s173 = scalar_lea.sflag [#allocation4], %s172
          %s174 = sand.u32 %s53, 1
          %s175 = smul.addr %s174, 8
          %s176 = scalar_lea.vmem [#allocation5], %s175
          %177 = dma.done %s173, 128
        $region40: #{glu.1} parent=35 // pred_fallthru
          _
      $region36: #{glu.1} parent=5 // pred_fallthru
        _
    $region6: #{glu.1} parent=1 // loop_footer
      %s17 = sadd.s32 1, %s13
    $region7: #{glu.1} parent=1 // loop_footer_branch
      %12 = sbr.rel target = $region3
    $region8: #{glu.1} parent=1 // loop_exit
      _
    %178 = vsyncpa [#allocation3], 1
    %s179 = scalar_lea.sflag [#allocation3], 1
    %180 = vsyncpa %s179, 1
    %181 = vsyncpa [#allocation4], 1
    %s182 = scalar_lea.sflag [#allocation4], 1
    %183 = vsyncpa %s182, 1

</llo_original>
